<compile_context>
chip_gen: v5e
topology: v5e:2x2
jax: 0.10.0
libtpu: 0.0.40
codegen_flags: <defaults>
</compile_context>

<pallas_src>
import math

import jax
import jax.numpy as jnp
from jax.experimental import pallas as pl
from jax.experimental.pallas import tpu as pltpu

DROPOUT_P = 0.1


def _attn_dropout_kernel(x1_ref, x2_ref, mask_ref, o_ref):
    # x1_ref, x2_ref: (TB, S, D)   mask_ref: (TB, S, S)   o_ref: (TB, S, D)
    x1 = x1_ref[...]
    x2 = x2_ref[...]

    d_model = x1_ref.shape[-1]
    scale = 1.0 / math.sqrt(float(d_model))

    # scores = x1 @ x2^T * scale  -> (TB, S, S), batched over TB on the MXU.
    s = jnp.einsum("bqd,bkd->bqk", x1, x2,
                   preferred_element_type=jnp.float32) * scale

    # Numerically-stable softmax over the last axis.
    m = jnp.max(s, axis=-1, keepdims=True)
    e = jnp.exp(s - m)
    denom = jnp.sum(e, axis=-1, keepdims=True)
    probs = e / denom

    # Dropout: mask already holds {0, 1/(1-p)} -> a single multiply.
    w = probs * mask_ref[...]

    # output = dropped @ x2 -> (TB, S, D)
    out = jnp.einsum("bqk,bkd->bqd", w.astype(x2.dtype), x2,
                     preferred_element_type=jnp.float32)
    o_ref[...] = out.astype(o_ref.dtype)


def _pick_block_batch(batch, target=342):
    """Largest divisor of `batch` that is <= target (342 sized for v7x VMEM)."""
    if batch <= target:
        return batch
    for tb in range(target, 0, -1):
        if batch % tb == 0:
            return tb
    return 1


def attention_dropout(x1, x2, key, dropout_p=DROPOUT_P):
    """x1, x2: (B, S, D) float32. Returns (B, S, D) float32."""
    B, S, D = x1.shape
    assert x2.shape == (B, S, D)

    # Precompute dropout keep-mask with inverted scaling folded in.
    keep = jax.random.bernoulli(key, 1.0 - dropout_p, (B, S, S))
    mask = keep.astype(jnp.float32) * (1.0 / (1.0 - dropout_p))

    TB = _pick_block_batch(B)
    grid = (B // TB,)

    cost = pl.CostEstimate(
        flops=int(4 * B * S * S * D),            # two matmuls
        transcendentals=int(B * S * S),          # exp in softmax
        bytes_accessed=int(4 * (3 * B * S * D + B * S * S)),
    )

    grid_spec = pltpu.PrefetchScalarGridSpec(
        num_scalar_prefetch=0,
        grid=grid,
        in_specs=[
            pl.BlockSpec((TB, S, D), lambda i: (i, 0, 0)),
            pl.BlockSpec((TB, S, D), lambda i: (i, 0, 0)),
            pl.BlockSpec((TB, S, S), lambda i: (i, 0, 0)),
        ],
        out_specs=pl.BlockSpec((TB, S, D), lambda i: (i, 0, 0)),
    )

    return pl.pallas_call(
        _attn_dropout_kernel,
        out_shape=jax.ShapeDtypeStruct((B, S, D), jnp.float32),
        grid_spec=grid_spec,
        compiler_params=pltpu.CompilerParams(
            dimension_semantics=("parallel",),   # grid steps independent
        ),
        cost_estimate=cost,
    )(x1, x2, mask)


def reference(x1, x2, key, dropout_p=DROPOUT_P):
    """Pure-JAX reference using the *same* dropout mask as the kernel wrapper."""
    B, S, D = x1.shape
    keep = jax.random.bernoulli(key, 1.0 - dropout_p, (B, S, S))
    mask = keep.astype(jnp.float32) * (1.0 / (1.0 - dropout_p))
    s = jnp.einsum("bqd,bkd->bqk", x1, x2) * (1.0 / math.sqrt(float(D)))
    probs = jax.nn.softmax(s, axis=-1)
    return jnp.einsum("bqk,bkd->bqd", probs * mask, x2)


if __name__ == "__main__":
    key = jax.random.PRNGKey(0)
    k1, k2, kd = jax.random.split(key, 3)

    # Small shapes consistent with the module: (batch, seq, d_model)
    B, S, D = 8, 12, 128
    x1 = jax.random.normal(k1, (B, S, D), dtype=jnp.float32)
    x2 = jax.random.normal(k2, (B, S, D), dtype=jnp.float32)

    out = attention_dropout(x1, x2, kd)
    out = jax.block_until_ready(out)

    ref = jax.block_until_ready(reference(x1, x2, kd))

    assert out.shape == (B, S, D)
    assert out.dtype == jnp.float32
    assert bool(jnp.all(jnp.isfinite(out)))
    assert bool(jnp.allclose(out, ref, atol=1e-4, rtol=1e-4)), (
        f"max abs err = {float(jnp.max(jnp.abs(out - ref)))}"
    )

    print("KERNEL_OK")
</pallas_src>

<mosaic_0001>
module attributes {stable_mosaic.version = 11 : i64} {
  func.func @_attn_dropout_kernel(%arg0: i32, %arg1: memref<8x12x128xf32, #tpu.memory_space<vmem>>, %arg2: memref<8x12x128xf32, #tpu.memory_space<vmem>>, %arg3: memref<8x12x12xf32, #tpu.memory_space<vmem>>, %arg4: memref<8x12x128xf32, #tpu.memory_space<vmem>>) attributes {dimension_semantics = [#tpu.dimension_semantics<parallel>], iteration_bounds = array<i64: 1>, scalar_prefetch = 0 : i64, scratch_operands = 0 : i64, tpu.core_type = #tpu.core_type<tc>, window_params = [{transform_indices = @transform_0, window_bounds = array<i64: 8, 12, 128>}, {transform_indices = @transform_1, window_bounds = array<i64: 8, 12, 128>}, {transform_indices = @transform_2, window_bounds = array<i64: 8, 12, 12>}, {transform_indices = @transform_3, window_bounds = array<i64: 8, 12, 128>}]} {
    %c0 = arith.constant 0 : index
    %c0_0 = arith.constant 0 : index
    %c0_1 = arith.constant 0 : index
    %0 = vector.load %arg1[%c0, %c0_0, %c0_1] : memref<8x12x128xf32, #tpu.memory_space<vmem>>, vector<8x12x128xf32>
    %c0_2 = arith.constant 0 : index
    %c0_3 = arith.constant 0 : index
    %c0_4 = arith.constant 0 : index
    %1 = vector.load %arg2[%c0_2, %c0_3, %c0_4] : memref<8x12x128xf32, #tpu.memory_space<vmem>>, vector<8x12x128xf32>
    "tpu.trace_start"() <{level = 10 : i32, message = "bqd,bkd->bqk"}> : () -> ()
    %cst = arith.constant dense<0.000000e+00> : vector<8x12x12xf32>
    %2 = tpu.matmul %0, %1, %cst {dimension_numbers = #tpu.dot_dimension_numbers<[2], [2], [1], [1], [0, 0, 0, 1, 1, 1], [0], [0]>} : vector<8x12x128xf32>, vector<8x12x128xf32>, vector<8x12x12xf32> -> vector<8x12x12xf32>
    "tpu.trace_stop"() : () -> ()
    %cst_5 = arith.constant 0.0883883461 : f32
    %3 = vector.broadcast %cst_5 : f32 to vector<8x12x12xf32>
    %4 = arith.mulf %2, %3 : vector<8x12x12xf32>
    %cst_6 = arith.constant dense<0xFF800000> : vector<8x12xf32>
    %5 = vector.multi_reduction <maximumf>, %4, %cst_6 [2] : vector<8x12x12xf32> to vector<8x12xf32>
    %6 = vector.shape_cast %5 : vector<8x12xf32> to vector<8x12x1xf32>
    %7 = vector.broadcast %6 : vector<8x12x1xf32> to vector<8x12x12xf32>
    %8 = arith.subf %4, %7 : vector<8x12x12xf32>
    %9 = math.exp %8 : vector<8x12x12xf32>
    %cst_7 = arith.constant dense<0.000000e+00> : vector<8x12xf32>
    %10 = vector.multi_reduction <add>, %9, %cst_7 [2] : vector<8x12x12xf32> to vector<8x12xf32>
    %11 = vector.shape_cast %10 : vector<8x12xf32> to vector<8x12x1xf32>
    %12 = vector.broadcast %11 : vector<8x12x1xf32> to vector<8x12x12xf32>
    %13 = arith.divf %9, %12 : vector<8x12x12xf32>
    %c0_8 = arith.constant 0 : index
    %c0_9 = arith.constant 0 : index
    %c0_10 = arith.constant 0 : index
    %14 = vector.load %arg3[%c0_8, %c0_9, %c0_10] : memref<8x12x12xf32, #tpu.memory_space<vmem>>, vector<8x12x12xf32>
    %15 = arith.mulf %13, %14 : vector<8x12x12xf32>
    "tpu.trace_start"() <{level = 10 : i32, message = "bqk,bkd->bqd"}> : () -> ()
    %cst_11 = arith.constant dense<0.000000e+00> : vector<8x12x128xf32>
    %16 = tpu.matmul %15, %1, %cst_11 {dimension_numbers = #tpu.dot_dimension_numbers<[2], [1], [1], [2], [0, 0, 0, 1, 1, 2], [0], [0]>} : vector<8x12x12xf32>, vector<8x12x128xf32>, vector<8x12x128xf32> -> vector<8x12x128xf32>
    "tpu.trace_stop"() : () -> ()
    %c0_12 = arith.constant 0 : index
    %c0_13 = arith.constant 0 : index
    %c0_14 = arith.constant 0 : index
    %17 = vector.load %arg4[%c0_12, %c0_13, %c0_14] : memref<8x12x128xf32, #tpu.memory_space<vmem>>, vector<8x12x128xf32>
    tpu.vector_store %arg4[%c0_12, %c0_13, %c0_14], %16 {strides = array<i32>} : memref<8x12x128xf32, #tpu.memory_space<vmem>>, vector<8x12x128xf32>,
    return
  }
  func.func @transform_0(%arg0: i32) -> (i32, i32, i32) {
    %c0_i32 = arith.constant 0 : i32
    %c0_i32_0 = arith.constant 0 : i32
    %c0_i32_1 = arith.constant 0 : i32
    return %arg0, %c0_i32, %c0_i32_0 : i32, i32, i32
  }
  func.func @transform_1(%arg0: i32) -> (i32, i32, i32) {
    %c0_i32 = arith.constant 0 : i32
    %c0_i32_0 = arith.constant 0 : i32
    %c0_i32_1 = arith.constant 0 : i32
    return %arg0, %c0_i32, %c0_i32_0 : i32, i32, i32
  }
  func.func @transform_2(%arg0: i32) -> (i32, i32, i32) {
    %c0_i32 = arith.constant 0 : i32
    %c0_i32_0 = arith.constant 0 : i32
    %c0_i32_1 = arith.constant 0 : i32
    return %arg0, %c0_i32, %c0_i32_0 : i32, i32, i32
  }
  func.func @transform_3(%arg0: i32) -> (i32, i32, i32) {
    %c0_i32 = arith.constant 0 : i32
    %c0_i32_0 = arith.constant 0 : i32
    %c0_i32_1 = arith.constant 0 : i32
    return %arg0, %c0_i32, %c0_i32_0 : i32, i32, i32
  }
}

</mosaic_0001>

<llo_original>
// kernel: tpu_custom_call.1
$region0: #{tpu_custom_call.1}
  #allocation0 [shape = 'u32[]', space=smem, size = 0x4, offset = 0x4, fixed_abs, tag = 'smem constant byte address 0x4 - core index']
  #allocation1 [shape = 'u32[72,128]{1,0:T(1,128)}', space=vmem, size = 0x9000, scoped, tag = 'internal scratch']
  %s0 = inlined_call_operand.vmem [shape: f32[8,12,128], index: 0, kind: input, shape index: {}]
  %s1 = inlined_call_operand.vmem [shape: f32[8,12,128], index: 1, kind: input, shape index: {}]
  %s2 = inlined_call_operand.vmem [shape: f32[8,12,12], index: 2, kind: input, shape index: {}]
  %s3 = inlined_call_operand.vmem [shape: f32[8,12,128], index: 3, kind: output, shape index: {}]
  %s4 = sld [smem:[#allocation0]]
  $region22: #{tpu_custom_call.1} parent=0
    _
  %s6 = ssub.s32 1, %s4
  %s7 = scalar_select 0, %s6, %s4
  // Predicated region
  $region2: #{tpu_custom_call.1} parent=0 // pred_check
    _
  $region3: #{tpu_custom_call.1} parent=0 // pred_check_branch
    %9 = sbr.rel (0) target = $region5
  $region4: #{tpu_custom_call.1} parent=0 // pred_region
    _
  $region5: #{tpu_custom_call.1} parent=0 // pred_fallthru
    _
  // Predicated region
  $region6: #{tpu_custom_call.1} parent=0 // pred_check
    _
  $region7: #{tpu_custom_call.1} parent=0 // pred_check_branch
    %11 = sbr.rel (0) target = $region9
  $region8: #{tpu_custom_call.1} parent=0 // pred_region
    _
  $region9: #{tpu_custom_call.1} parent=0 // pred_fallthru
    _
  // Predicated region
  $region10: #{tpu_custom_call.1} parent=0 // pred_check
    _
  $region11: #{tpu_custom_call.1} parent=0 // pred_check_branch
    %13 = sbr.rel (0) target = $region13
  $region12: #{tpu_custom_call.1} parent=0 // pred_region
    _
  $region13: #{tpu_custom_call.1} parent=0 // pred_fallthru
    _
  %v14 = vld [vmem:[%s0] sm:$0xff]
  %v15 = vld [vmem:[%s0 + $0x8] sm:$0xf]
  %v16 = vld [vmem:[%s0 + $0x10] sm:$0xff]
  %v17 = vld [vmem:[%s0 + $0x18] sm:$0xf]
  %v18 = vld [vmem:[%s0 + $0x20] sm:$0xff]
  %v19 = vld [vmem:[%s0 + $0x28] sm:$0xf]
  %v20 = vld [vmem:[%s0 + $0x30] sm:$0xff]
  %v21 = vld [vmem:[%s0 + $0x38] sm:$0xf]
  %v22 = vld [vmem:[%s0 + $0x40] sm:$0xff]
  %v23 = vld [vmem:[%s0 + $0x48] sm:$0xf]
  %v24 = vld [vmem:[%s0 + $0x50] sm:$0xff]
  %v25 = vld [vmem:[%s0 + $0x58] sm:$0xf]
  %v26 = vld [vmem:[%s0 + $0x60] sm:$0xff]
  %v27 = vld [vmem:[%s0 + $0x68] sm:$0xf]
  %v28 = vld [vmem:[%s0 + $0x70] sm:$0xff]
  %v29 = vld [vmem:[%s0 + $0x78] sm:$0xf]
  %v30 = vld [vmem:[%s1] sm:$0xff]
  %v31 = vld [vmem:[%s1 + $0x8] sm:$0xf]
  %v32 = vld [vmem:[%s1 + $0x10] sm:$0xff]
  %v33 = vld [vmem:[%s1 + $0x18] sm:$0xf]
  %v34 = vld [vmem:[%s1 + $0x20] sm:$0xff]
  %v35 = vld [vmem:[%s1 + $0x28] sm:$0xf]
  %v36 = vld [vmem:[%s1 + $0x30] sm:$0xff]
  %v37 = vld [vmem:[%s1 + $0x38] sm:$0xf]
  %v38 = vld [vmem:[%s1 + $0x40] sm:$0xff]
  %v39 = vld [vmem:[%s1 + $0x48] sm:$0xf]
  %v40 = vld [vmem:[%s1 + $0x50] sm:$0xff]
  %v41 = vld [vmem:[%s1 + $0x58] sm:$0xf]
  %v42 = vld [vmem:[%s1 + $0x60] sm:$0xff]
  %v43 = vld [vmem:[%s1 + $0x68] sm:$0xf]
  %v44 = vld [vmem:[%s1 + $0x70] sm:$0xff]
  %v45 = vld [vmem:[%s1 + $0x78] sm:$0xf]
  %46 = vmatpush.xpose.msra.mxu0 0.0
  %47 = vmatpush.xpose.msra.mxu0 0.0
  %48 = vmatpush.xpose.msra.mxu0 0.0
  %49 = vmatpush.xpose.msra.mxu0 0.0
  %50 = vmatpush.xpose.msra.mxu0 0.0
  %51 = vmatpush.xpose.msra.mxu0 0.0
  %52 = vmatpush.xpose.msra.mxu0 0.0
  %53 = vmatpush.xpose.msra.mxu0 0.0
  %54 = vmatpush.xpose.msra.mxu0 0.0
  %55 = vmatpush.xpose.msra.mxu0 0.0
  %56 = vmatpush.xpose.msra.mxu0 0.0
  %57 = vmatpush.xpose.msra.mxu0 0.0
  %58 = vmatpush.xpose.msra.mxu0 0.0
  %59 = vmatpush.xpose.msra.mxu0 0.0
  %60 = vmatpush.xpose.msra.mxu0 %v31
  %61 = vmatpush.xpose.msra.mxu0 %v30
  %62 = vmatmul.f32.gmra.mxu0 %v14
  %v63 = vpop.f32.mrf.mxu0
  %v64 = vadd.f32 0.0, %v63
  %65 = vmatmul.f32.gmra.mxu0 %v15
  %v66 = vpop.f32.mrf.mxu0
  %v67 = vadd.f32 0.0, %v66
  %68 = vdwg.mxu0
  %69 = vmatpush.xpose.msra.mxu0 0.0
  %70 = vmatpush.xpose.msra.mxu0 0.0
  %71 = vmatpush.xpose.msra.mxu0 0.0
  %72 = vmatpush.xpose.msra.mxu0 0.0
  %73 = vmatpush.xpose.msra.mxu0 0.0
  %74 = vmatpush.xpose.msra.mxu0 0.0
  %75 = vmatpush.xpose.msra.mxu0 0.0
  %76 = vmatpush.xpose.msra.mxu0 0.0
  %77 = vmatpush.xpose.msra.mxu0 0.0
  %78 = vmatpush.xpose.msra.mxu0 0.0
  %79 = vmatpush.xpose.msra.mxu0 0.0
  %80 = vmatpush.xpose.msra.mxu0 0.0
  %81 = vmatpush.xpose.msra.mxu0 0.0
  %82 = vmatpush.xpose.msra.mxu0 0.0
  %83 = vmatpush.xpose.msra.mxu0 %v33
  %84 = vmatpush.xpose.msra.mxu0 %v32
  %85 = vmatmul.f32.gmra.mxu0 %v16
  %v86 = vpop.f32.mrf.mxu0
  %v87 = vadd.f32 0.0, %v86
  %88 = vmatmul.f32.gmra.mxu0 %v17
  %v89 = vpop.f32.mrf.mxu0
  %v90 = vadd.f32 0.0, %v89
  %91 = vdwg.mxu0
  %92 = vmatpush.xpose.msra.mxu0 0.0
  %93 = vmatpush.xpose.msra.mxu0 0.0
  %94 = vmatpush.xpose.msra.mxu0 0.0
  %95 = vmatpush.xpose.msra.mxu0 0.0
  %96 = vmatpush.xpose.msra.mxu0 0.0
  %97 = vmatpush.xpose.msra.mxu0 0.0
  %98 = vmatpush.xpose.msra.mxu0 0.0
  %99 = vmatpush.xpose.msra.mxu0 0.0
  %100 = vmatpush.xpose.msra.mxu0 0.0
  %101 = vmatpush.xpose.msra.mxu0 0.0
  %102 = vmatpush.xpose.msra.mxu0 0.0
  %103 = vmatpush.xpose.msra.mxu0 0.0
  %104 = vmatpush.xpose.msra.mxu0 0.0
  %105 = vmatpush.xpose.msra.mxu0 0.0
  %106 = vmatpush.xpose.msra.mxu0 %v35
  %107 = vmatpush.xpose.msra.mxu0 %v34
  %108 = vmatmul.f32.gmra.mxu0 %v18
  %v109 = vpop.f32.mrf.mxu0
  %v110 = vadd.f32 0.0, %v109
  %111 = vmatmul.f32.gmra.mxu0 %v19
  %v112 = vpop.f32.mrf.mxu0
  %v113 = vadd.f32 0.0, %v112
  %114 = vdwg.mxu0
  %115 = vmatpush.xpose.msra.mxu0 0.0
  %116 = vmatpush.xpose.msra.mxu0 0.0
  %117 = vmatpush.xpose.msra.mxu0 0.0
  %118 = vmatpush.xpose.msra.mxu0 0.0
  %119 = vmatpush.xpose.msra.mxu0 0.0
  %120 = vmatpush.xpose.msra.mxu0 0.0
  %121 = vmatpush.xpose.msra.mxu0 0.0
  %122 = vmatpush.xpose.msra.mxu0 0.0
  %123 = vmatpush.xpose.msra.mxu0 0.0
  %124 = vmatpush.xpose.msra.mxu0 0.0
  %125 = vmatpush.xpose.msra.mxu0 0.0
  %126 = vmatpush.xpose.msra.mxu0 0.0
  %127 = vmatpush.xpose.msra.mxu0 0.0
  %128 = vmatpush.xpose.msra.mxu0 0.0
  %129 = vmatpush.xpose.msra.mxu0 %v37
  %130 = vmatpush.xpose.msra.mxu0 %v36
  %131 = vmatmul.f32.gmra.mxu0 %v20
  %v132 = vpop.f32.mrf.mxu0
  %v133 = vadd.f32 0.0, %v132
  %134 = vmatmul.f32.gmra.mxu0 %v21
  %v135 = vpop.f32.mrf.mxu0
  %v136 = vadd.f32 0.0, %v135
  %137 = vdwg.mxu0
  %138 = vmatpush.xpose.msra.mxu0 0.0
  %139 = vmatpush.xpose.msra.mxu0 0.0
  %140 = vmatpush.xpose.msra.mxu0 0.0
  %141 = vmatpush.xpose.msra.mxu0 0.0
  %142 = vmatpush.xpose.msra.mxu0 0.0
  %143 = vmatpush.xpose.msra.mxu0 0.0
  %144 = vmatpush.xpose.msra.mxu0 0.0
  %145 = vmatpush.xpose.msra.mxu0 0.0
  %146 = vmatpush.xpose.msra.mxu0 0.0
  %147 = vmatpush.xpose.msra.mxu0 0.0
  %148 = vmatpush.xpose.msra.mxu0 0.0
  %149 = vmatpush.xpose.msra.mxu0 0.0
  %150 = vmatpush.xpose.msra.mxu0 0.0
  %151 = vmatpush.xpose.msra.mxu0 0.0
  %152 = vmatpush.xpose.msra.mxu0 %v39
  %153 = vmatpush.xpose.msra.mxu0 %v38
  %154 = vmatmul.f32.gmra.mxu0 %v22
  %v155 = vpop.f32.mrf.mxu0
  %v156 = vadd.f32 0.0, %v155
  %157 = vmatmul.f32.gmra.mxu0 %v23
  %v158 = vpop.f32.mrf.mxu0
  %v159 = vadd.f32 0.0, %v158
  %160 = vdwg.mxu0
  %161 = vmatpush.xpose.msra.mxu0 0.0
  %162 = vmatpush.xpose.msra.mxu0 0.0
  %163 = vmatpush.xpose.msra.mxu0 0.0
  %164 = vmatpush.xpose.msra.mxu0 0.0
  %165 = vmatpush.xpose.msra.mxu0 0.0
  %166 = vmatpush.xpose.msra.mxu0 0.0
  %167 = vmatpush.xpose.msra.mxu0 0.0
  %168 = vmatpush.xpose.msra.mxu0 0.0
  %169 = vmatpush.xpose.msra.mxu0 0.0
  %170 = vmatpush.xpose.msra.mxu0 0.0
  %171 = vmatpush.xpose.msra.mxu0 0.0
  %172 = vmatpush.xpose.msra.mxu0 0.0
  %173 = vmatpush.xpose.msra.mxu0 0.0
  %174 = vmatpush.xpose.msra.mxu0 0.0
  %175 = vmatpush.xpose.msra.mxu0 %v41
  %176 = vmatpush.xpose.msra.mxu0 %v40
  %177 = vmatmul.f32.gmra.mxu0 %v24
  %v178 = vpop.f32.mrf.mxu0
  %v179 = vadd.f32 0.0, %v178
  %180 = vmatmul.f32.gmra.mxu0 %v25
  %v181 = vpop.f32.mrf.mxu0
  %v182 = vadd.f32 0.0, %v181
  %183 = vdwg.mxu0
  %184 = vmatpush.xpose.msra.mxu0 0.0
  %185 = vmatpush.xpose.msra.mxu0 0.0
  %186 = vmatpush.xpose.msra.mxu0 0.0
  %187 = vmatpush.xpose.msra.mxu0 0.0
  %188 = vmatpush.xpose.msra.mxu0 0.0
  %189 = vmatpush.xpose.msra.mxu0 0.0
  %190 = vmatpush.xpose.msra.mxu0 0.0
  %191 = vmatpush.xpose.msra.mxu0 0.0
  %192 = vmatpush.xpose.msra.mxu0 0.0
  %193 = vmatpush.xpose.msra.mxu0 0.0
  %194 = vmatpush.xpose.msra.mxu0 0.0
  %195 = vmatpush.xpose.msra.mxu0 0.0
  %196 = vmatpush.xpose.msra.mxu0 0.0
  %197 = vmatpush.xpose.msra.mxu0 0.0
  %198 = vmatpush.xpose.msra.mxu0 %v43
  %199 = vmatpush.xpose.msra.mxu0 %v42
  %200 = vmatmul.f32.gmra.mxu0 %v26
  %v201 = vpop.f32.mrf.mxu0
  %v202 = vadd.f32 0.0, %v201
  %203 = vmatmul.f32.gmra.mxu0 %v27
  %v204 = vpop.f32.mrf.mxu0
  %v205 = vadd.f32 0.0, %v204
  %206 = vdwg.mxu0
  %207 = vmatpush.xpose.msra.mxu0 0.0
  %208 = vmatpush.xpose.msra.mxu0 0.0
  %209 = vmatpush.xpose.msra.mxu0 0.0
  %210 = vmatpush.xpose.msra.mxu0 0.0
  %211 = vmatpush.xpose.msra.mxu0 0.0
  %212 = vmatpush.xpose.msra.mxu0 0.0
  %213 = vmatpush.xpose.msra.mxu0 0.0
  %214 = vmatpush.xpose.msra.mxu0 0.0
  %215 = vmatpush.xpose.msra.mxu0 0.0
  %216 = vmatpush.xpose.msra.mxu0 0.0
  %217 = vmatpush.xpose.msra.mxu0 0.0
  %218 = vmatpush.xpose.msra.mxu0 0.0
  %219 = vmatpush.xpose.msra.mxu0 0.0
  %220 = vmatpush.xpose.msra.mxu0 0.0
  %221 = vmatpush.xpose.msra.mxu0 %v45
  %222 = vmatpush.xpose.msra.mxu0 %v44
  %223 = vmatmul.f32.gmra.mxu0 %v28
  %v224 = vpop.f32.mrf.mxu0
  %v225 = vadd.f32 0.0, %v224
  %226 = vmatmul.f32.gmra.mxu0 %v29
  %v227 = vpop.f32.mrf.mxu0
  %v228 = vadd.f32 0.0, %v227
  %229 = vdwg.mxu0
  %v230 = vmul.f32 %v64, 0.088388346
  %v231 = vmul.f32 %v67, 0.088388346
  %v232 = vmul.f32 %v87, 0.088388346
  %v233 = vmul.f32 %v90, 0.088388346
  %v234 = vmul.f32 %v110, 0.088388346
  %v235 = vmul.f32 %v113, 0.088388346
  %v236 = vmul.f32 %v133, 0.088388346
  %v237 = vmul.f32 %v136, 0.088388346
  %v238 = vmul.f32 %v156, 0.088388346
  %v239 = vmul.f32 %v159, 0.088388346
  %v240 = vmul.f32 %v179, 0.088388346
  %v241 = vmul.f32 %v182, 0.088388346
  %v242 = vmul.f32 %v202, 0.088388346
  %v243 = vmul.f32 %v205, 0.088388346
  %v244 = vmul.f32 %v225, 0.088388346
  %v245 = vmul.f32 %v228, 0.088388346
  %vm246 = vcmask 97280
  %v247 = vsel %vm246, %v230, -inf
  %248 = vmax.xlane.f32.xlu0 %v247
  %v249 = vpop.xlane.xlu0 %248
  %vm250 = vcmask 93184
  %v251 = vsel %vm250, %v231, -inf
  %252 = vmax.xlane.f32.xlu0 %v251
  %v253 = vpop.xlane.xlu0 %252
  %v254 = vsel %vm246, %v232, -inf
  %255 = vmax.xlane.f32.xlu0 %v254
  %v256 = vpop.xlane.xlu0 %255
  %v257 = vsel %vm250, %v233, -inf
  %258 = vmax.xlane.f32.xlu0 %v257
  %v259 = vpop.xlane.xlu0 %258
  %v260 = vsel %vm246, %v234, -inf
  %261 = vmax.xlane.f32.xlu0 %v260
  %v262 = vpop.xlane.xlu0 %261
  %v263 = vsel %vm250, %v235, -inf
  %264 = vmax.xlane.f32.xlu0 %v263
  %v265 = vpop.xlane.xlu0 %264
  %v266 = vsel %vm246, %v236, -inf
  %267 = vmax.xlane.f32.xlu0 %v266
  %v268 = vpop.xlane.xlu0 %267
  %v269 = vsel %vm250, %v237, -inf
  %270 = vmax.xlane.f32.xlu0 %v269
  %v271 = vpop.xlane.xlu0 %270
  %v272 = vsel %vm246, %v238, -inf
  %273 = vmax.xlane.f32.xlu0 %v272
  %v274 = vpop.xlane.xlu0 %273
  %v275 = vsel %vm250, %v239, -inf
  %276 = vmax.xlane.f32.xlu0 %v275
  %v277 = vpop.xlane.xlu0 %276
  %v278 = vsel %vm246, %v240, -inf
  %279 = vmax.xlane.f32.xlu0 %v278
  %v280 = vpop.xlane.xlu0 %279
  %v281 = vsel %vm250, %v241, -inf
  %282 = vmax.xlane.f32.xlu0 %v281
  %v283 = vpop.xlane.xlu0 %282
  %v284 = vsel %vm246, %v242, -inf
  %285 = vmax.xlane.f32.xlu0 %v284
  %v286 = vpop.xlane.xlu0 %285
  %v287 = vsel %vm250, %v243, -inf
  %288 = vmax.xlane.f32.xlu0 %v287
  %v289 = vpop.xlane.xlu0 %288
  %v290 = vsel %vm246, %v244, -inf
  %291 = vmax.xlane.f32.xlu0 %v290
  %v292 = vpop.xlane.xlu0 %291
  %v293 = vsel %vm250, %v245, -inf
  %294 = vmax.xlane.f32.xlu0 %v293
  %v295 = vpop.xlane.xlu0 %294
  %v296 = vsub.f32 %v230, %v249
  %v297 = vsub.f32 %v231, %v253
  %v298 = vsub.f32 %v232, %v256
  %v299 = vsub.f32 %v233, %v259
  %v300 = vsub.f32 %v234, %v262
  %v301 = vsub.f32 %v235, %v265
  %v302 = vsub.f32 %v236, %v268
  %v303 = vsub.f32 %v237, %v271
  %v304 = vsub.f32 %v238, %v274
  %v305 = vsub.f32 %v239, %v277
  %v306 = vsub.f32 %v240, %v280
  %v307 = vsub.f32 %v241, %v283
  %v308 = vsub.f32 %v242, %v286
  %v309 = vsub.f32 %v243, %v289
  %v310 = vsub.f32 %v244, %v292
  %v311 = vsub.f32 %v245, %v295
  %v312 = vmul.f32 %v296, 1.442695
  %v313 = vpow.pop %v312
  %v314 = vmul.f32 %v297, 1.442695
  %v315 = vpow.pop %v314
  %v316 = vmul.f32 %v298, 1.442695
  %v317 = vpow.pop %v316
  %v318 = vmul.f32 %v299, 1.442695
  %v319 = vpow.pop %v318
  %v320 = vmul.f32 %v300, 1.442695
  %v321 = vpow.pop %v320
  %v322 = vmul.f32 %v301, 1.442695
  %v323 = vpow.pop %v322
  %v324 = vmul.f32 %v302, 1.442695
  %v325 = vpow.pop %v324
  %v326 = vmul.f32 %v303, 1.442695
  %v327 = vpow.pop %v326
  %v328 = vmul.f32 %v304, 1.442695
  %v329 = vpow.pop %v328
  %v330 = vmul.f32 %v305, 1.442695
  %v331 = vpow.pop %v330
  %v332 = vmul.f32 %v306, 1.442695
  %v333 = vpow.pop %v332
  %v334 = vmul.f32 %v307, 1.442695
  %v335 = vpow.pop %v334
  %v336 = vmul.f32 %v308, 1.442695
  %v337 = vpow.pop %v336
  %v338 = vmul.f32 %v309, 1.442695
  %v339 = vpow.pop %v338
  %v340 = vmul.f32 %v310, 1.442695
  %v341 = vpow.pop %v340
  %v342 = vmul.f32 %v311, 1.442695
  %v343 = vpow.pop %v342
  %v344 = vsel %vm246, %v313, 0.0
  %345 = vadd.xlane.f32.xlu0 %v344
  %v346 = vpop.xlane.xlu0 %345
  %v347 = vsel %vm250, %v315, 0.0
  %348 = vadd.xlane.f32.xlu0 %v347
  %v349 = vpop.xlane.xlu0 %348
  %v350 = vsel %vm246, %v317, 0.0
  %351 = vadd.xlane.f32.xlu0 %v350
  %v352 = vpop.xlane.xlu0 %351
  %v353 = vsel %vm250, %v319, 0.0
  %354 = vadd.xlane.f32.xlu0 %v353
  %v355 = vpop.xlane.xlu0 %354
  %v356 = vsel %vm246, %v321, 0.0
  %357 = vadd.xlane.f32.xlu0 %v356
  %v358 = vpop.xlane.xlu0 %357
  %v359 = vsel %vm250, %v323, 0.0
  %360 = vadd.xlane.f32.xlu0 %v359
  %v361 = vpop.xlane.xlu0 %360
  %v362 = vsel %vm246, %v325, 0.0
  %363 = vadd.xlane.f32.xlu0 %v362
  %v364 = vpop.xlane.xlu0 %363
  %v365 = vsel %vm250, %v327, 0.0
  %366 = vadd.xlane.f32.xlu0 %v365
  %v367 = vpop.xlane.xlu0 %366
  %v368 = vsel %vm246, %v329, 0.0
  %369 = vadd.xlane.f32.xlu0 %v368
  %v370 = vpop.xlane.xlu0 %369
  %v371 = vsel %vm250, %v331, 0.0
  %372 = vadd.xlane.f32.xlu0 %v371
  %v373 = vpop.xlane.xlu0 %372
  %v374 = vsel %vm246, %v333, 0.0
  %375 = vadd.xlane.f32.xlu0 %v374
  %v376 = vpop.xlane.xlu0 %375
  %v377 = vsel %vm250, %v335, 0.0
  %378 = vadd.xlane.f32.xlu0 %v377
  %v379 = vpop.xlane.xlu0 %378
  %v380 = vsel %vm246, %v337, 0.0
  %381 = vadd.xlane.f32.xlu0 %v380
  %v382 = vpop.xlane.xlu0 %381
  %v383 = vsel %vm250, %v339, 0.0
  %384 = vadd.xlane.f32.xlu0 %v383
  %v385 = vpop.xlane.xlu0 %384
  %v386 = vsel %vm246, %v341, 0.0
  %387 = vadd.xlane.f32.xlu0 %v386
  %v388 = vpop.xlane.xlu0 %387
  %v389 = vsel %vm250, %v343, 0.0
  %390 = vadd.xlane.f32.xlu0 %v389
  %v391 = vpop.xlane.xlu0 %390
  %v392 = vrcp.pop %v346
  %v393 = vmul.f32 %v346, %v392
  %v394 = vsub.f32 1.0, %v393
  %v395 = vmul.f32 %v392, %v394
  %v396 = vadd.f32 %v392, %v395
  %vm397 = vweird.f32 %v346
  %vm398 = vweird.f32 %v392
  %vm399 = vmor %vm397, %vm398
  %v400 = vsel %vm399, %v392, %v396
  %v401 = vand.u32 2147483647, %v346
  %vm402 = vcmp.eq.f32.partialorder %v401, 8.507059e+37
  %v403 = vand.u32 %v346, 2147483648
  %v404 = vor.u32 1.1754944e-38, %v403
  %v405 = vsel %vm402, %v404, %v400
  %v406 = vmul.f32 %v313, %v405
  %v407 = vrcp.pop %v349
  %v408 = vmul.f32 %v349, %v407
  %v409 = vsub.f32 1.0, %v408
  %v410 = vmul.f32 %v407, %v409
  %v411 = vadd.f32 %v407, %v410
  %vm412 = vweird.f32 %v349
  %vm413 = vweird.f32 %v407
  %vm414 = vmor %vm412, %vm413
  %v415 = vsel %vm414, %v407, %v411
  %v416 = vand.u32 2147483647, %v349
  %vm417 = vcmp.eq.f32.partialorder %v416, 8.507059e+37
  %v418 = vand.u32 %v349, 2147483648
  %v419 = vor.u32 1.1754944e-38, %v418
  %v420 = vsel %vm417, %v419, %v415
  %v421 = vmul.f32 %v315, %v420
  %v422 = vrcp.pop %v352
  %v423 = vmul.f32 %v352, %v422
  %v424 = vsub.f32 1.0, %v423
  %v425 = vmul.f32 %v422, %v424
  %v426 = vadd.f32 %v422, %v425
  %vm427 = vweird.f32 %v352
  %vm428 = vweird.f32 %v422
  %vm429 = vmor %vm427, %vm428
  %v430 = vsel %vm429, %v422, %v426
  %v431 = vand.u32 2147483647, %v352
  %vm432 = vcmp.eq.f32.partialorder %v431, 8.507059e+37
  %v433 = vand.u32 %v352, 2147483648
  %v434 = vor.u32 1.1754944e-38, %v433
  %v435 = vsel %vm432, %v434, %v430
  %v436 = vmul.f32 %v317, %v435
  %v437 = vrcp.pop %v355
  %v438 = vmul.f32 %v355, %v437
  %v439 = vsub.f32 1.0, %v438
  %v440 = vmul.f32 %v437, %v439
  %v441 = vadd.f32 %v437, %v440
  %vm442 = vweird.f32 %v355
  %vm443 = vweird.f32 %v437
  %vm444 = vmor %vm442, %vm443
  %v445 = vsel %vm444, %v437, %v441
  %v446 = vand.u32 2147483647, %v355
  %vm447 = vcmp.eq.f32.partialorder %v446, 8.507059e+37
  %v448 = vand.u32 %v355, 2147483648
  %v449 = vor.u32 1.1754944e-38, %v448
  %v450 = vsel %vm447, %v449, %v445
  %v451 = vmul.f32 %v319, %v450
  %v452 = vrcp.pop %v358
  %v453 = vmul.f32 %v358, %v452
  %v454 = vsub.f32 1.0, %v453
  %v455 = vmul.f32 %v452, %v454
  %v456 = vadd.f32 %v452, %v455
  %vm457 = vweird.f32 %v358
  %vm458 = vweird.f32 %v452
  %vm459 = vmor %vm457, %vm458
  %v460 = vsel %vm459, %v452, %v456
  %v461 = vand.u32 2147483647, %v358
  %vm462 = vcmp.eq.f32.partialorder %v461, 8.507059e+37
  %v463 = vand.u32 %v358, 2147483648
  %v464 = vor.u32 1.1754944e-38, %v463
  %v465 = vsel %vm462, %v464, %v460
  %v466 = vmul.f32 %v321, %v465
  %v467 = vrcp.pop %v361
  %v468 = vmul.f32 %v361, %v467
  %v469 = vsub.f32 1.0, %v468
  %v470 = vmul.f32 %v467, %v469
  %v471 = vadd.f32 %v467, %v470
  %vm472 = vweird.f32 %v361
  %vm473 = vweird.f32 %v467
  %vm474 = vmor %vm472, %vm473
  %v475 = vsel %vm474, %v467, %v471
  %v476 = vand.u32 2147483647, %v361
  %vm477 = vcmp.eq.f32.partialorder %v476, 8.507059e+37
  %v478 = vand.u32 %v361, 2147483648
  %v479 = vor.u32 1.1754944e-38, %v478
  %v480 = vsel %vm477, %v479, %v475
  %v481 = vmul.f32 %v323, %v480
  %v482 = vrcp.pop %v364
  %v483 = vmul.f32 %v364, %v482
  %v484 = vsub.f32 1.0, %v483
  %v485 = vmul.f32 %v482, %v484
  %v486 = vadd.f32 %v482, %v485
  %vm487 = vweird.f32 %v364
  %vm488 = vweird.f32 %v482
  %vm489 = vmor %vm487, %vm488
  %v490 = vsel %vm489, %v482, %v486
  %v491 = vand.u32 2147483647, %v364
  %vm492 = vcmp.eq.f32.partialorder %v491, 8.507059e+37
  %v493 = vand.u32 %v364, 2147483648
  %v494 = vor.u32 1.1754944e-38, %v493
  %v495 = vsel %vm492, %v494, %v490
  %v496 = vmul.f32 %v325, %v495
  %v497 = vrcp.pop %v367
  %v498 = vmul.f32 %v367, %v497
  %v499 = vsub.f32 1.0, %v498
  %v500 = vmul.f32 %v497, %v499
  %v501 = vadd.f32 %v497, %v500
  %vm502 = vweird.f32 %v367
  %vm503 = vweird.f32 %v497
  %vm504 = vmor %vm502, %vm503
  %v505 = vsel %vm504, %v497, %v501
  %v506 = vand.u32 2147483647, %v367
  %vm507 = vcmp.eq.f32.partialorder %v506, 8.507059e+37
  %v508 = vand.u32 %v367, 2147483648
  %v509 = vor.u32 1.1754944e-38, %v508
  %v510 = vsel %vm507, %v509, %v505
  %v511 = vmul.f32 %v327, %v510
  %v512 = vrcp.pop %v370
  %v513 = vmul.f32 %v370, %v512
  %v514 = vsub.f32 1.0, %v513
  %v515 = vmul.f32 %v512, %v514
  %v516 = vadd.f32 %v512, %v515
  %vm517 = vweird.f32 %v370
  %vm518 = vweird.f32 %v512
  %vm519 = vmor %vm517, %vm518
  %v520 = vsel %vm519, %v512, %v516
  %v521 = vand.u32 2147483647, %v370
  %vm522 = vcmp.eq.f32.partialorder %v521, 8.507059e+37
  %v523 = vand.u32 %v370, 2147483648
  %v524 = vor.u32 1.1754944e-38, %v523
  %v525 = vsel %vm522, %v524, %v520
  %v526 = vmul.f32 %v329, %v525
  %v527 = vrcp.pop %v373
  %v528 = vmul.f32 %v373, %v527
  %v529 = vsub.f32 1.0, %v528
  %v530 = vmul.f32 %v527, %v529
  %v531 = vadd.f32 %v527, %v530
  %vm532 = vweird.f32 %v373
  %vm533 = vweird.f32 %v527
  %vm534 = vmor %vm532, %vm533
  %v535 = vsel %vm534, %v527, %v531
  %v536 = vand.u32 2147483647, %v373
  %vm537 = vcmp.eq.f32.partialorder %v536, 8.507059e+37
  %v538 = vand.u32 %v373, 2147483648
  %v539 = vor.u32 1.1754944e-38, %v538
  %v540 = vsel %vm537, %v539, %v535
  %v541 = vmul.f32 %v331, %v540
  %v542 = vrcp.pop %v376
  %v543 = vmul.f32 %v376, %v542
  %v544 = vsub.f32 1.0, %v543
  %v545 = vmul.f32 %v542, %v544
  %v546 = vadd.f32 %v542, %v545
  %vm547 = vweird.f32 %v376
  %vm548 = vweird.f32 %v542
  %vm549 = vmor %vm547, %vm548
  %v550 = vsel %vm549, %v542, %v546
  %v551 = vand.u32 2147483647, %v376
  %vm552 = vcmp.eq.f32.partialorder %v551, 8.507059e+37
  %v553 = vand.u32 %v376, 2147483648
  %v554 = vor.u32 1.1754944e-38, %v553
  %v555 = vsel %vm552, %v554, %v550
  %v556 = vmul.f32 %v333, %v555
  %v557 = vrcp.pop %v379
  %v558 = vmul.f32 %v379, %v557
  %v559 = vsub.f32 1.0, %v558
  %v560 = vmul.f32 %v557, %v559
  %v561 = vadd.f32 %v557, %v560
  %vm562 = vweird.f32 %v379
  %vm563 = vweird.f32 %v557
  %vm564 = vmor %vm562, %vm563
  %v565 = vsel %vm564, %v557, %v561
  %v566 = vand.u32 2147483647, %v379
  %vm567 = vcmp.eq.f32.partialorder %v566, 8.507059e+37
  %v568 = vand.u32 %v379, 2147483648
  %v569 = vor.u32 1.1754944e-38, %v568
  %v570 = vsel %vm567, %v569, %v565
  %v571 = vmul.f32 %v335, %v570
  %v572 = vrcp.pop %v382
  %v573 = vmul.f32 %v382, %v572
  %v574 = vsub.f32 1.0, %v573
  %v575 = vmul.f32 %v572, %v574
  %v576 = vadd.f32 %v572, %v575
  %vm577 = vweird.f32 %v382
  %vm578 = vweird.f32 %v572
  %vm579 = vmor %vm577, %vm578
  %v580 = vsel %vm579, %v572, %v576
  %v581 = vand.u32 2147483647, %v382
  %vm582 = vcmp.eq.f32.partialorder %v581, 8.507059e+37
  %v583 = vand.u32 %v382, 2147483648
  %v584 = vor.u32 1.1754944e-38, %v583
  %v585 = vsel %vm582, %v584, %v580
  %v586 = vmul.f32 %v337, %v585
  %v587 = vrcp.pop %v385
  %v588 = vmul.f32 %v385, %v587
  %v589 = vsub.f32 1.0, %v588
  %v590 = vmul.f32 %v587, %v589
  %v591 = vadd.f32 %v587, %v590
  %vm592 = vweird.f32 %v385
  %vm593 = vweird.f32 %v587
  %vm594 = vmor %vm592, %vm593
  %v595 = vsel %vm594, %v587, %v591
  %v596 = vand.u32 2147483647, %v385
  %vm597 = vcmp.eq.f32.partialorder %v596, 8.507059e+37
  %v598 = vand.u32 %v385, 2147483648
  %v599 = vor.u32 1.1754944e-38, %v598
  %v600 = vsel %vm597, %v599, %v595
  %v601 = vmul.f32 %v339, %v600
  %v602 = vrcp.pop %v388
  %v603 = vmul.f32 %v388, %v602
  %v604 = vsub.f32 1.0, %v603
  %v605 = vmul.f32 %v602, %v604
  %v606 = vadd.f32 %v602, %v605
  %vm607 = vweird.f32 %v388
  %vm608 = vweird.f32 %v602
  %vm609 = vmor %vm607, %vm608
  %v610 = vsel %vm609, %v602, %v606
  %v611 = vand.u32 2147483647, %v388
  %vm612 = vcmp.eq.f32.partialorder %v611, 8.507059e+37
  %v613 = vand.u32 %v388, 2147483648
  %v614 = vor.u32 1.1754944e-38, %v613
  %v615 = vsel %vm612, %v614, %v610
  %v616 = vmul.f32 %v341, %v615
  %v617 = vrcp.pop %v391
  %v618 = vmul.f32 %v391, %v617
  %v619 = vsub.f32 1.0, %v618
  %v620 = vmul.f32 %v617, %v619
  %v621 = vadd.f32 %v617, %v620
  %vm622 = vweird.f32 %v391
  %vm623 = vweird.f32 %v617
  %vm624 = vmor %vm622, %vm623
  %v625 = vsel %vm624, %v617, %v621
  %v626 = vand.u32 2147483647, %v391
  %vm627 = vcmp.eq.f32.partialorder %v626, 8.507059e+37
  %v628 = vand.u32 %v391, 2147483648
  %v629 = vor.u32 1.1754944e-38, %v628
  %v630 = vsel %vm627, %v629, %v625
  %v631 = vmul.f32 %v343, %v630
  %v632 = vld [vmem:[%s2] sm:$0xff]
  %v633 = vld [vmem:[%s2 + $0x8] sm:$0xf]
  %v634 = vld [vmem:[%s2 + $0x10] sm:$0xff]
  %v635 = vld [vmem:[%s2 + $0x18] sm:$0xf]
  %v636 = vld [vmem:[%s2 + $0x20] sm:$0xff]
  %v637 = vld [vmem:[%s2 + $0x28] sm:$0xf]
  %v638 = vld [vmem:[%s2 + $0x30] sm:$0xff]
  %v639 = vld [vmem:[%s2 + $0x38] sm:$0xf]
  %v640 = vld [vmem:[%s2 + $0x40] sm:$0xff]
  %v641 = vld [vmem:[%s2 + $0x48] sm:$0xf]
  %v642 = vld [vmem:[%s2 + $0x50] sm:$0xff]
  %v643 = vld [vmem:[%s2 + $0x58] sm:$0xf]
  %v644 = vld [vmem:[%s2 + $0x60] sm:$0xff]
  %v645 = vld [vmem:[%s2 + $0x68] sm:$0xf]
  %v646 = vld [vmem:[%s2 + $0x70] sm:$0xff]
  %v647 = vld [vmem:[%s2 + $0x78] sm:$0xf]
  %v648 = vmul.f32 %v406, %v632
  %v649 = vmul.f32 %v421, %v633
  %v650 = vmul.f32 %v436, %v634
  %v651 = vmul.f32 %v451, %v635
  %v652 = vmul.f32 %v466, %v636
  %v653 = vmul.f32 %v481, %v637
  %v654 = vmul.f32 %v496, %v638
  %v655 = vmul.f32 %v511, %v639
  %v656 = vmul.f32 %v526, %v640
  %v657 = vmul.f32 %v541, %v641
  %v658 = vmul.f32 %v556, %v642
  %v659 = vmul.f32 %v571, %v643
  %v660 = vmul.f32 %v586, %v644
  %v661 = vmul.f32 %v601, %v645
  %v662 = vmul.f32 %v616, %v646
  %v663 = vmul.f32 %v631, %v647
  %v665 = vsel %vm246, %v648, 0
  %v668 = vsel %vm246, %v649, 0
  %vm670 = vcmask 1043456
  %v672 = vsel %vm670, %v31, 0
  %674 = vmatpush.msra.mxu0 0.0
  %675 = vmatpush.msra.mxu0 0.0
  %676 = vmatpush.msra.mxu0 0.0
  %677 = vmatpush.msra.mxu0 0.0
  %678 = vmatpush.msra.mxu0 0.0
  %679 = vmatpush.msra.mxu0 0.0
  %680 = vmatpush.msra.mxu0 0.0
  %681 = vmatpush.msra.mxu0 0.0
  %682 = vmatpush.msra.mxu0 0.0
  %683 = vmatpush.msra.mxu0 0.0
  %684 = vmatpush.msra.mxu0 0.0
  %685 = vmatpush.msra.mxu0 0.0
  %686 = vmatpush.msra.mxu0 0.0
  %687 = vmatpush.msra.mxu0 0.0
  %688 = vmatpush.msra.mxu0 %v672
  %689 = vmatpush.msra.mxu0 %v30
  %690 = vmatmul.f32.gmra.mxu0 %v665
  %v691 = vpop.f32.mrf.mxu0
  %v692 = vadd.f32 0.0, %v691
  %693 = vmatmul.f32.gmra.mxu0 %v668
  %v694 = vpop.f32.mrf.mxu0
  %v695 = vadd.f32 0.0, %v694
  %696 = vdwg.mxu0
  %v698 = vsel %vm246, %v650, 0
  %v701 = vsel %vm246, %v651, 0
  %v704 = vsel %vm670, %v33, 0
  %706 = vmatpush.msra.mxu0 0.0
  %707 = vmatpush.msra.mxu0 0.0
  %708 = vmatpush.msra.mxu0 0.0
  %709 = vmatpush.msra.mxu0 0.0
  %710 = vmatpush.msra.mxu0 0.0
  %711 = vmatpush.msra.mxu0 0.0
  %712 = vmatpush.msra.mxu0 0.0
  %713 = vmatpush.msra.mxu0 0.0
  %714 = vmatpush.msra.mxu0 0.0
  %715 = vmatpush.msra.mxu0 0.0
  %716 = vmatpush.msra.mxu0 0.0
  %717 = vmatpush.msra.mxu0 0.0
  %718 = vmatpush.msra.mxu0 0.0
  %719 = vmatpush.msra.mxu0 0.0
  %720 = vmatpush.msra.mxu0 %v704
  %721 = vmatpush.msra.mxu0 %v32
  %722 = vmatmul.f32.gmra.mxu0 %v698
  %v723 = vpop.f32.mrf.mxu0
  %v724 = vadd.f32 0.0, %v723
  %725 = vmatmul.f32.gmra.mxu0 %v701
  %v726 = vpop.f32.mrf.mxu0
  %v727 = vadd.f32 0.0, %v726
  %728 = vdwg.mxu0
  %v730 = vsel %vm246, %v652, 0
  %v733 = vsel %vm246, %v653, 0
  %v736 = vsel %vm670, %v35, 0
  %738 = vmatpush.msra.mxu0 0.0
  %739 = vmatpush.msra.mxu0 0.0
  %740 = vmatpush.msra.mxu0 0.0
  %741 = vmatpush.msra.mxu0 0.0
  %742 = vmatpush.msra.mxu0 0.0
  %743 = vmatpush.msra.mxu0 0.0
  %744 = vmatpush.msra.mxu0 0.0
  %745 = vmatpush.msra.mxu0 0.0
  %746 = vmatpush.msra.mxu0 0.0
  %747 = vmatpush.msra.mxu0 0.0
  %748 = vmatpush.msra.mxu0 0.0
  %749 = vmatpush.msra.mxu0 0.0
  %750 = vmatpush.msra.mxu0 0.0
  %751 = vmatpush.msra.mxu0 0.0
  %752 = vmatpush.msra.mxu0 %v736
  %753 = vmatpush.msra.mxu0 %v34
  %754 = vmatmul.f32.gmra.mxu0 %v730
  %v755 = vpop.f32.mrf.mxu0
  %v756 = vadd.f32 0.0, %v755
  %757 = vmatmul.f32.gmra.mxu0 %v733
  %v758 = vpop.f32.mrf.mxu0
  %v759 = vadd.f32 0.0, %v758
  %760 = vdwg.mxu0
  %v762 = vsel %vm246, %v654, 0
  %v765 = vsel %vm246, %v655, 0
  %v768 = vsel %vm670, %v37, 0
  %770 = vmatpush.msra.mxu0 0.0
  %771 = vmatpush.msra.mxu0 0.0
  %772 = vmatpush.msra.mxu0 0.0
  %773 = vmatpush.msra.mxu0 0.0
  %774 = vmatpush.msra.mxu0 0.0
  %775 = vmatpush.msra.mxu0 0.0
  %776 = vmatpush.msra.mxu0 0.0
  %777 = vmatpush.msra.mxu0 0.0
  %778 = vmatpush.msra.mxu0 0.0
  %779 = vmatpush.msra.mxu0 0.0
  %780 = vmatpush.msra.mxu0 0.0
  %781 = vmatpush.msra.mxu0 0.0
  %782 = vmatpush.msra.mxu0 0.0
  %783 = vmatpush.msra.mxu0 0.0
  %784 = vmatpush.msra.mxu0 %v768
  %785 = vmatpush.msra.mxu0 %v36
  %786 = vmatmul.f32.gmra.mxu0 %v762
  %v787 = vpop.f32.mrf.mxu0
  %v788 = vadd.f32 0.0, %v787
  %789 = vmatmul.f32.gmra.mxu0 %v765
  %v790 = vpop.f32.mrf.mxu0
  %v791 = vadd.f32 0.0, %v790
  %792 = vdwg.mxu0
  %v794 = vsel %vm246, %v656, 0
  %v797 = vsel %vm246, %v657, 0
  %v800 = vsel %vm670, %v39, 0
  %802 = vmatpush.msra.mxu0 0.0
  %803 = vmatpush.msra.mxu0 0.0
  %804 = vmatpush.msra.mxu0 0.0
  %805 = vmatpush.msra.mxu0 0.0
  %806 = vmatpush.msra.mxu0 0.0
  %807 = vmatpush.msra.mxu0 0.0
  %808 = vmatpush.msra.mxu0 0.0
  %809 = vmatpush.msra.mxu0 0.0
  %810 = vmatpush.msra.mxu0 0.0
  %811 = vmatpush.msra.mxu0 0.0
  %812 = vmatpush.msra.mxu0 0.0
  %813 = vmatpush.msra.mxu0 0.0
  %814 = vmatpush.msra.mxu0 0.0
  %815 = vmatpush.msra.mxu0 0.0
  %816 = vmatpush.msra.mxu0 %v800
  %817 = vmatpush.msra.mxu0 %v38
  %818 = vmatmul.f32.gmra.mxu0 %v794
  %v819 = vpop.f32.mrf.mxu0
  %v820 = vadd.f32 0.0, %v819
  %821 = vmatmul.f32.gmra.mxu0 %v797
  %v822 = vpop.f32.mrf.mxu0
  %v823 = vadd.f32 0.0, %v822
  %824 = vdwg.mxu0
  %v826 = vsel %vm246, %v658, 0
  %v829 = vsel %vm246, %v659, 0
  %v832 = vsel %vm670, %v41, 0
  %834 = vmatpush.msra.mxu0 0.0
  %835 = vmatpush.msra.mxu0 0.0
  %836 = vmatpush.msra.mxu0 0.0
  %837 = vmatpush.msra.mxu0 0.0
  %838 = vmatpush.msra.mxu0 0.0
  %839 = vmatpush.msra.mxu0 0.0
  %840 = vmatpush.msra.mxu0 0.0
  %841 = vmatpush.msra.mxu0 0.0
  %842 = vmatpush.msra.mxu0 0.0
  %843 = vmatpush.msra.mxu0 0.0
  %844 = vmatpush.msra.mxu0 0.0
  %845 = vmatpush.msra.mxu0 0.0
  %846 = vmatpush.msra.mxu0 0.0
  %847 = vmatpush.msra.mxu0 0.0
  %848 = vmatpush.msra.mxu0 %v832
  %849 = vmatpush.msra.mxu0 %v40
  %850 = vmatmul.f32.gmra.mxu0 %v826
  %v851 = vpop.f32.mrf.mxu0
  %v852 = vadd.f32 0.0, %v851
  %853 = vmatmul.f32.gmra.mxu0 %v829
  %v854 = vpop.f32.mrf.mxu0
  %v855 = vadd.f32 0.0, %v854
  %856 = vdwg.mxu0
  %v858 = vsel %vm246, %v660, 0
  %v861 = vsel %vm246, %v661, 0
  %v864 = vsel %vm670, %v43, 0
  %866 = vmatpush.msra.mxu0 0.0
  %867 = vmatpush.msra.mxu0 0.0
  %868 = vmatpush.msra.mxu0 0.0
  %869 = vmatpush.msra.mxu0 0.0
  %870 = vmatpush.msra.mxu0 0.0
  %871 = vmatpush.msra.mxu0 0.0
  %872 = vmatpush.msra.mxu0 0.0
  %873 = vmatpush.msra.mxu0 0.0
  %874 = vmatpush.msra.mxu0 0.0
  %875 = vmatpush.msra.mxu0 0.0
  %876 = vmatpush.msra.mxu0 0.0
  %877 = vmatpush.msra.mxu0 0.0
  %878 = vmatpush.msra.mxu0 0.0
  %879 = vmatpush.msra.mxu0 0.0
  %880 = vmatpush.msra.mxu0 %v864
  %881 = vmatpush.msra.mxu0 %v42
  %882 = vmatmul.f32.gmra.mxu0 %v858
  %v883 = vpop.f32.mrf.mxu0
  %v884 = vadd.f32 0.0, %v883
  %885 = vmatmul.f32.gmra.mxu0 %v861
  %v886 = vpop.f32.mrf.mxu0
  %v887 = vadd.f32 0.0, %v886
  %888 = vdwg.mxu0
  %v890 = vsel %vm246, %v662, 0
  %v893 = vsel %vm246, %v663, 0
  %v896 = vsel %vm670, %v45, 0
  %898 = vmatpush.msra.mxu0 0.0
  %899 = vmatpush.msra.mxu0 0.0
  %900 = vmatpush.msra.mxu0 0.0
  %901 = vmatpush.msra.mxu0 0.0
  %902 = vmatpush.msra.mxu0 0.0
  %903 = vmatpush.msra.mxu0 0.0
  %904 = vmatpush.msra.mxu0 0.0
  %905 = vmatpush.msra.mxu0 0.0
  %906 = vmatpush.msra.mxu0 0.0
  %907 = vmatpush.msra.mxu0 0.0
  %908 = vmatpush.msra.mxu0 0.0
  %909 = vmatpush.msra.mxu0 0.0
  %910 = vmatpush.msra.mxu0 0.0
  %911 = vmatpush.msra.mxu0 0.0
  %912 = vmatpush.msra.mxu0 %v896
  %913 = vmatpush.msra.mxu0 %v44
  %914 = vmatmul.f32.gmra.mxu0 %v890
  %v915 = vpop.f32.mrf.mxu0
  %v916 = vadd.f32 0.0, %v915
  %917 = vmatmul.f32.gmra.mxu0 %v893
  %v918 = vpop.f32.mrf.mxu0
  %v919 = vadd.f32 0.0, %v918
  %920 = vdwg.mxu0
  %921 = vst [vmem:[%s3] sm:$0xff] %v692
  %922 = vst [vmem:[%s3 + $0x8] sm:$0xf] %v695
  %923 = vst [vmem:[%s3 + $0x10] sm:$0xff] %v724
  %924 = vst [vmem:[%s3 + $0x18] sm:$0xf] %v727
  %925 = vst [vmem:[%s3 + $0x20] sm:$0xff] %v756
  %926 = vst [vmem:[%s3 + $0x28] sm:$0xf] %v759
  %927 = vst [vmem:[%s3 + $0x30] sm:$0xff] %v788
  %928 = vst [vmem:[%s3 + $0x38] sm:$0xf] %v791
  %929 = vst [vmem:[%s3 + $0x40] sm:$0xff] %v820
  %930 = vst [vmem:[%s3 + $0x48] sm:$0xf] %v823
  %931 = vst [vmem:[%s3 + $0x50] sm:$0xff] %v852
  %932 = vst [vmem:[%s3 + $0x58] sm:$0xf] %v855
  %933 = vst [vmem:[%s3 + $0x60] sm:$0xff] %v884
  %934 = vst [vmem:[%s3 + $0x68] sm:$0xf] %v887
  %935 = vst [vmem:[%s3 + $0x70] sm:$0xff] %v916
  %936 = vst [vmem:[%s3 + $0x78] sm:$0xf] %v919
  // Predicated region
  $region14: #{tpu_custom_call.1} parent=0 // pred_check
    _
  $region15: #{tpu_custom_call.1} parent=0 // pred_check_branch
    %938 = sbr.rel (0) target = $region17
  $region16: #{tpu_custom_call.1} parent=0 // pred_region
    _
  $region17: #{tpu_custom_call.1} parent=0 // pred_fallthru
    _
  // Predicated region
  $region18: #{tpu_custom_call.1} parent=0 // pred_check
    _
  $region19: #{tpu_custom_call.1} parent=0 // pred_check_branch
    %940 = sbr.rel (0) target = $region21
  $region20: #{tpu_custom_call.1} parent=0 // pred_region
    _
  $region21: #{tpu_custom_call.1} parent=0 // pred_fallthru
    _

</llo_original>
